<compile_context>
chip_gen: v7x
topology: tpu7x:2x2x1
jax: 0.10.0
libtpu: 0.0.40
codegen_flags: <defaults>
</compile_context>

<pallas_src>
import functools
import math

import jax
import jax.numpy as jnp
from jax.experimental import pallas as pl
from jax.experimental.pallas import tpu as pltpu

LRELU_ALPHA = 0.2
LRELU_DEF_GAIN = math.sqrt(2.0)  # bias_act.activation_funcs['lrelu'].def_gain


def _round_up(n, m):
    return (n + m - 1) // m * m


def _pad_to(a, shape):
    pads = [(0, t - s) for s, t in zip(a.shape, shape)]
    if all(p == (0, 0) for p in pads):
        return a
    return jnp.pad(a, pads)


def _vmem_capacity_bytes():
    # Generation-aware VMEM capacity; conservative (v7x per-core) fallback.
    try:
        info = pltpu.get_tpu_info()
        cap = int(getattr(info, "vmem_capacity_bytes", 0))
        if cap > 0:
            return cap
    except Exception:
        pass
    return 64 << 20


def style_linear_kernel(x_ref, wd_ref, bias_ref, out_ref, *, act_gain, compute_dtype):
    # x_ref:    (1, TP, Cin_p)    native x dtype (cast to compute dtype on the VPU here)
    # wd_ref:   (1, Cin_p, Cout_p) compute dtype, modulated + demodulated + gain-folded + transposed
    # bias_ref: (1, Cout_p)       f32 (gain-folded)
    # out_ref:  (1, TP, Cout_p)   x dtype
    xv = x_ref[0].astype(compute_dtype)
    y = jnp.dot(xv, wd_ref[0], preferred_element_type=jnp.float32)  # MXU, f32 accumulation
    y = y + bias_ref[...]
    y = jnp.where(y >= 0.0, y, LRELU_ALPHA * y)
    if act_gain != 1.0:  # only taken when gain could not be folded (gain <= 0)
        y = y * act_gain
    out_ref[0] = y.astype(out_ref.dtype)


def style_linear_forward(x, w_lat, affine_w, affine_b, weight, bias, gain=1.0,
                         compute_dtype=jnp.bfloat16):
    """x: [B, P, C_in], w_lat: [B, w_dim]. weight: [C_out, C_in(,1,1)]. Returns [B, P, C_out] in x.dtype."""
    B, P, Cin = x.shape
    weight2d = weight.reshape(weight.shape[0], weight.shape[1]).astype(jnp.float32)
    Cout = weight2d.shape[0]
    Wdim = w_lat.shape[1]

    # ---- hoisted per-batch modulation / demodulation (tiny; kept in f32) ----
    styles = (w_lat.astype(jnp.float32)
              @ (affine_w.astype(jnp.float32).T * (1.0 / math.sqrt(Wdim)))
              + affine_b.astype(jnp.float32)[None, :])                          # [B, Cin]
    wmod = weight2d[None, :, :] * styles[:, None, :]                            # [B, Cout, Cin]
    dcoef = jax.lax.rsqrt(jnp.sum(wmod * wmod, axis=-1, keepdims=True) + 1e-8)  # [B, Cout, 1]
    wd = jnp.swapaxes(wmod * dcoef, 1, 2)                                       # [B, Cin, Cout]

    # ---- fold activation gain into weight & bias (lrelu positive homogeneity, gain > 0) ----
    act_gain = float(LRELU_DEF_GAIN * gain)
    bias_f32 = bias.astype(jnp.float32)
    if act_gain > 0.0:
        wd = wd * act_gain
        bias_f32 = bias_f32 * act_gain
        kernel_gain = 1.0
    else:
        kernel_gain = act_gain

    out_dtype = x.dtype
    x_item = jnp.dtype(x.dtype).itemsize
    wd_item = jnp.dtype(compute_dtype).itemsize
    out_item = jnp.dtype(out_dtype).itemsize

    # ---- TPU-friendly padding: lane-dense channels ----
    Cin_p = _round_up(Cin, 128)
    Cout_p = _round_up(Cout, 128)

    # ---- pick P tile from the real VMEM budget (generation-aware) ----
    vmem_cap = _vmem_capacity_bytes()
    budget = int(vmem_cap * 0.75)  # leave headroom for compiler scratch
    wd_bytes = Cin_p * Cout_p * wd_item
    # Per-batch weight only changes at batch boundaries; for wide channels single-buffer it
    # so the VMEM goes to bigger P tiles instead.
    wd_bufs = 1 if wd_bytes >= (4 << 20) else 2
    fixed = wd_bufs * wd_bytes + 2 * Cout_p * 4 + (2 << 20)
    per_row = 2 * (Cin_p * x_item + Cout_p * out_item)  # double-buffered x/out tiles, per P row
    P_sub = _round_up(P, 8)
    TP = None
    for cand in [P_sub] + [t for t in (4096, 2048, 1024, 512, 256, 128) if t < P_sub]:
        if fixed + cand * per_row <= budget:
            TP = cand
            break
    if TP is None:
        TP = 128
    P_pad = _round_up(P, TP)
    n_p_tiles = P_pad // TP

    # x kept in its native dtype (cast happens in-kernel); pad only when needed.
    x_p = _pad_to(x, (B, P_pad, Cin_p))
    wd_p = _pad_to(wd.astype(compute_dtype), (B, Cin_p, Cout_p))
    bias_p = _pad_to(bias_f32.reshape(1, Cout), (1, Cout_p))

    kernel = functools.partial(style_linear_kernel, act_gain=kernel_gain,
                               compute_dtype=compute_dtype)

    flops = 2 * B * P_pad * Cin_p * Cout_p
    bytes_accessed = (B * P_pad * Cin_p * x_item        # x
                      + B * Cin_p * Cout_p * wd_item    # wd
                      + Cout_p * 4                      # bias
                      + B * P_pad * Cout_p * out_item)  # out
    needed_vmem = fixed + TP * per_row
    vmem_limit = int(min(max(needed_vmem, 16 << 20), vmem_cap))

    wd_spec_kwargs = {}
    if wd_bufs == 1:
        wd_spec_kwargs["pipeline_mode"] = pl.Buffered(1)

    if B == 1:
        # Put the P-tile axis first so the megacore split (v7x) has work even with a single batch.
        grid = (n_p_tiles, B)
        x_map = lambda p, b: (b, p, 0)
        wd_map = lambda p, b: (b, 0, 0)
        bias_map = lambda p, b: (0, 0)
        out_map = lambda p, b: (b, p, 0)
    else:
        # Batch outer so the per-batch modulated weight block is fetched once per batch.
        grid = (B, n_p_tiles)
        x_map = lambda b, p: (b, p, 0)
        wd_map = lambda b, p: (b, 0, 0)
        bias_map = lambda b, p: (0, 0)
        out_map = lambda b, p: (b, p, 0)

    out = pl.pallas_call(
        kernel,
        out_shape=jax.ShapeDtypeStruct((B, P_pad, Cout_p), out_dtype),
        grid_spec=pltpu.PrefetchScalarGridSpec(
            num_scalar_prefetch=0,
            grid=grid,
            in_specs=[
                pl.BlockSpec((1, TP, Cin_p), x_map),                          # x tile (native dtype)
                pl.BlockSpec((1, Cin_p, Cout_p), wd_map, **wd_spec_kwargs),   # modulated weight (per batch)
                pl.BlockSpec((1, Cout_p), bias_map),                          # bias (shared)
            ],
            out_specs=pl.BlockSpec((1, TP, Cout_p), out_map),
        ),
        compiler_params=pltpu.CompilerParams(
            dimension_semantics=("parallel", "parallel"),
            vmem_limit_bytes=vmem_limit),
        cost_estimate=pl.CostEstimate(flops=flops, transcendentals=0,
                                      bytes_accessed=bytes_accessed),
    )(x_p, wd_p, bias_p)

    return out[:, :P, :Cout]


def style_linear_reference(x, w_lat, affine_w, affine_b, weight, bias, gain=1.0):
    Wdim = w_lat.shape[1]
    weight2d = weight.reshape(weight.shape[0], weight.shape[1])
    styles = w_lat @ (affine_w * (1.0 / math.sqrt(Wdim))).T + affine_b          # [B, Cin]
    wmod = weight2d[None, :, :] * styles[:, None, :]                            # [B, Cout, Cin]
    dcoef = jax.lax.rsqrt(jnp.sum(wmod * wmod, axis=-1) + 1e-8)                 # [B, Cout]
    wd = wmod * dcoef[:, :, None]                                               # [B, Cout, Cin]
    y = jnp.einsum('bpi,boi->bpo', x, wd)                                       # [B, P, Cout]
    y = y + bias[None, None, :]
    y = jnp.where(y >= 0, y, LRELU_ALPHA * y)
    return y * (LRELU_DEF_GAIN * gain)


if __name__ == "__main__":
    # Small shapes consistent with the module's forward: x [b, p, c], w [b, w_dim].
    B, P = 2, 16
    IN_CH, OUT_CH, W_DIM = 8, 16, 32

    key = jax.random.PRNGKey(0)
    kx, kw, ka, kc = jax.random.split(key, 4)

    x = jax.random.normal(kx, (B, P, IN_CH), dtype=jnp.float32)
    w_lat = jax.random.normal(kw, (B, W_DIM), dtype=jnp.float32)

    # Deterministic parameter init (matching __init__ shapes / init values):
    affine_w = jax.random.normal(ka, (IN_CH, W_DIM), dtype=jnp.float32)       # FullyConnectedLayer.weight
    affine_b = jnp.ones((IN_CH,), dtype=jnp.float32)                          # bias_init=1
    conv_w = jax.random.normal(kc, (OUT_CH, IN_CH, 1, 1), dtype=jnp.float32)  # self.weight
    conv_b = jnp.zeros((OUT_CH,), dtype=jnp.float32)                          # self.bias

    out = style_linear_forward(x, w_lat, affine_w, affine_b, conv_w, conv_b, gain=1.0)
    out = jax.block_until_ready(out)

    ref = style_linear_reference(x, w_lat, affine_w, affine_b, conv_w, conv_b, gain=1.0)
    assert out.shape == (B, P, OUT_CH)
    assert out.dtype == x.dtype
    # bf16 matmul operands with f32 accumulation -> compare at bf16-level tolerance.
    assert jnp.allclose(out.astype(jnp.float32), ref, atol=3e-2, rtol=3e-2), "mismatch vs reference"

    print("KERNEL_OK")
</pallas_src>

<mosaic_0001>
module attributes {stable_mosaic.version = 11 : i64} {
  func.func @style_linear_kernel(%arg0: i32, %arg1: i32, %arg2: memref<1x16x128xf32, #tpu.memory_space<vmem>>, %arg3: memref<1x128x128xbf16, #tpu.memory_space<vmem>>, %arg4: memref<1x128xf32, #tpu.memory_space<vmem>>, %arg5: memref<1x16x128xf32, #tpu.memory_space<vmem>>) attributes {dimension_semantics = [#tpu.dimension_semantics<parallel>, #tpu.dimension_semantics<parallel>], iteration_bounds = array<i64: 2, 1>, scalar_prefetch = 0 : i64, scratch_operands = 0 : i64, tpu.core_type = #tpu.core_type<tc>, window_params = [{transform_indices = @transform_0, window_bounds = array<i64: 1, 16, 128>}, {transform_indices = @transform_1, window_bounds = array<i64: 1, 128, 128>}, {pipeline_mode = #tpu.pipeline_mode<synchronous>, transform_indices = @transform_2, window_bounds = array<i64: 1, 128>}, {transform_indices = @transform_3, window_bounds = array<i64: 1, 16, 128>}]} {
    %c0 = arith.constant 0 : index
    %c0_0 = arith.constant 0 : index
    %c0_1 = arith.constant 0 : index
    %0 = vector.load %arg2[%c0, %c0_0, %c0_1] : memref<1x16x128xf32, #tpu.memory_space<vmem>>, vector<1x16x128xf32>
    %1 = vector.shape_cast %0 : vector<1x16x128xf32> to vector<16x128xf32>
    %2 = arith.truncf %1 : vector<16x128xf32> to vector<16x128xbf16>
    %c0_2 = arith.constant 0 : index
    %c0_3 = arith.constant 0 : index
    %c0_4 = arith.constant 0 : index
    %3 = vector.load %arg3[%c0_2, %c0_3, %c0_4] : memref<1x128x128xbf16, #tpu.memory_space<vmem>>, vector<1x128x128xbf16>
    %4 = vector.shape_cast %3 : vector<1x128x128xbf16> to vector<128x128xbf16>
    %cst = arith.constant dense<0.000000e+00> : vector<16x128xf32>
    %5 = tpu.matmul %2, %4, %cst {dimension_numbers = #tpu.dot_dimension_numbers<[1], [0], [0], [1], [0, 0, 1, 1], [], []>} : vector<16x128xbf16>, vector<128x128xbf16>, vector<16x128xf32> -> vector<16x128xf32>
    %c0_5 = arith.constant 0 : index
    %c0_6 = arith.constant 0 : index
    %6 = vector.load %arg4[%c0_5, %c0_6] : memref<1x128xf32, #tpu.memory_space<vmem>>, vector<1x128xf32>
    %7 = vector.broadcast %6 : vector<1x128xf32> to vector<16x128xf32>
    %8 = arith.addf %5, %7 : vector<16x128xf32>
    %cst_7 = arith.constant 0.000000e+00 : f32
    %9 = vector.broadcast %cst_7 : f32 to vector<16x128xf32>
    %10 = arith.cmpf oge, %8, %9 : vector<16x128xf32>
    %cst_8 = arith.constant 2.000000e-01 : f32
    %11 = vector.broadcast %cst_8 : f32 to vector<16x128xf32>
    %12 = arith.mulf %11, %8 : vector<16x128xf32>
    %13 = arith.select %10, %8, %12 : vector<16x128xi1>, vector<16x128xf32>
    %c0_9 = arith.constant 0 : index
    %c0_10 = arith.constant 0 : index
    %c0_11 = arith.constant 0 : index
    %14 = vector.load %arg5[%c0_9, %c0_10, %c0_11] : memref<1x16x128xf32, #tpu.memory_space<vmem>>, vector<1x16x128xf32>
    %15 = vector.shape_cast %14 : vector<1x16x128xf32> to vector<16x128xf32>
    %16 = vector.shape_cast %13 : vector<16x128xf32> to vector<1x16x128xf32>
    tpu.vector_store %arg5[%c0_9, %c0_10, %c0_11], %16 {strides = array<i32>} : memref<1x16x128xf32, #tpu.memory_space<vmem>>, vector<1x16x128xf32>,
    return
  }
  func.func @transform_0(%arg0: i32, %arg1: i32) -> (i32, i32, i32) {
    %c0_i32 = arith.constant 0 : i32
    %c0_i32_0 = arith.constant 0 : i32
    return %arg0, %arg1, %c0_i32 : i32, i32, i32
  }
  func.func @transform_1(%arg0: i32, %arg1: i32) -> (i32, i32, i32) {
    %c0_i32 = arith.constant 0 : i32
    %c0_i32_0 = arith.constant 0 : i32
    %c0_i32_1 = arith.constant 0 : i32
    return %arg0, %c0_i32, %c0_i32_0 : i32, i32, i32
  }
  func.func @transform_2(%arg0: i32, %arg1: i32) -> (i32, i32) {
    %c0_i32 = arith.constant 0 : i32
    %c0_i32_0 = arith.constant 0 : i32
    %c0_i32_1 = arith.constant 0 : i32
    return %c0_i32, %c0_i32_0 : i32, i32
  }
  func.func @transform_3(%arg0: i32, %arg1: i32) -> (i32, i32, i32) {
    %c0_i32 = arith.constant 0 : i32
    %c0_i32_0 = arith.constant 0 : i32
    return %arg0, %arg1, %c0_i32 : i32, i32, i32
  }
}

</mosaic_0001>

<llo_original>
// kernel: tpu_custom_call.1
$region0: #{tpu_custom_call.1}
  #allocation0 [shape = 'u32[]', space=smem, size = 0x4, offset = 0x4, fixed_abs, tag = 'smem constant byte address 0x4 - core index']
  #allocation1 [shape = 'u32[144,128]{1,0:T(1,128)}', space=vmem, size = 0x12000, scoped, tag = 'internal scratch']
  %s0 = inlined_call_operand.hbm [shape: f32[2,16,128], index: 0, kind: input, shape index: {}]
  %s1 = inlined_call_operand.hbm [shape: bf16[2,128,128], index: 1, kind: input, shape index: {}]
  %s2 = inlined_call_operand.vmem [shape: f32[1,128], index: 2, kind: input, shape index: {}]
  %s3 = inlined_call_operand.hbm [shape: f32[2,16,128], index: 3, kind: output, shape index: {}]
  %s4 = sld [smem:[#allocation0]]
  $region53: #{tpu_custom_call.1} parent=0
    _
  %s6 = ssub.s32 1, %s4
  %s7 = scalar_select 0, %s6, %s4
  $region1: #{tpu_custom_call.1} parent=0
    #allocation2 [shape = 'u8[16384]{0}', space=vmem, size = 0x4000, scoped, tag = 'input window, operand 0']
    #allocation3 [shape = 's32[2]{0}', space=sflag, size = 0x8, scoped, tag = 'scoped memory for tpu_custom_call.1']
    #allocation4 [shape = 's32[2]{0}', space=sflag, size = 0x8, scoped, tag = 'scoped memory for tpu_custom_call.1']
    #allocation5 [shape = 'u8[65536]{0}', space=vmem, size = 0x10000, scoped, tag = 'input window, operand 1']
    #allocation6 [shape = 's32[2]{0}', space=sflag, size = 0x8, scoped, tag = 'scoped memory for tpu_custom_call.1']
    #allocation7 [shape = 'u8[16384]{0}', space=vmem, size = 0x4000, scoped, tag = 'output window, operand 0']
    %8 = vsyncpa [#allocation3], 0
    %s9 = scalar_lea.sflag [#allocation3], 1
    %10 = vsyncpa %s9, 0
    %11 = vsyncpa [#allocation6], 0
    %s12 = scalar_lea.sflag [#allocation6], 1
    %13 = vsyncpa %s12, 0
    %14 = vsyncpa [#allocation4], 0
    %s15 = scalar_lea.sflag [#allocation4], 1
    %16 = vsyncpa %s15, 0
    loop: start=0, step=1, limit=4
    $region2: #{tpu_custom_call.1} parent=1 // loop_pre_header
      _
    $region3: #{tpu_custom_call.1} parent=1 // loop_header
      %s18 = sphi 0, %s22
      %p19 = scmp.ge.s32.totalorder %s18, 4
      %s25 = sphi 0, %s37
      %s26 = sphi 0, %s33
      %s27 = sphi 0, %s25
      %s28 = sphi 0, %s26
      %s29 = sphi 0, %s27
      %s30 = sphi 0, %s28
      %s42 = sphi 0, %s44
      %s45 = sphi 0, %s42
      %s46 = sphi 0, %s45
      %s62 = sphi 0, %s46
      %s68 = sphi 0, %s70
      %s71 = sphi 0, %s68
      %s72 = sphi 0, %s71
      %s88 = sphi 0, %s72
      %s92 = sphi 0, %s92
      %s94 = sphi 0, %s92
      %s95 = sphi 0, %s94
      %s109 = sphi 0, %s95
      %s117 = sphi 0, %s119
      %s120 = sphi 0, %s117
      %s121 = sphi 0, %s120
      %s137 = sphi 0, %s121
    $region4: #{tpu_custom_call.1} parent=1 // loop_header_branch
      %21 = sbr.rel (%p19) target = $region8
    $region5: #{tpu_custom_call.1} parent=1 // loop_body
      %s23 = ssub.s32 %s18, 1
      %s24 = ssub.s32 %s18, 2
      %s31 = sadd.s32 1, %s26
      %p32 = scmp.ge.s32.totalorder %s31, 1
      %s33 = scalar_select %p32, 0, %s31
      %s34 = sadd.s32 1, %s25
      %s35 = scalar_select %p32, %s34, %s25
      %p36 = scmp.ge.s32.totalorder %s35, 2
      %s37 = scalar_select %p36, 0, %s35
      %s38 = ssub.s32 %s25, %s37
      %s39 = ssub.s32 %s26, %s33
      %s40 = sor.u32 %s38, %s39
      %p41 = scmp.eq.s32.totalorder %s40, 0
      %s43 = sadd.s32 %s42, 1
      %s44 = scalar_select %p41, %s42, %s43
      %p47 = pneg %p41
      %p48 = scmp.eq.s32.totalorder %s18, 1
      %p49 = por %p47, %p48
      %p50 = scmp.ne.s32.totalorder %s42, %s45
      %p51 = scmp.eq.s32.totalorder %s18, 0
      %p52 = por %p50, %p51
      %p53 = scmp.ne.s32.totalorder %s42, %s45
      %p54 = scmp.eq.s32.totalorder %s23, 1
      %p55 = por %p53, %p54
      %p56 = scmp.ne.s32.totalorder %s45, %s46
      %p57 = scmp.eq.s32.totalorder %s23, 0
      %p58 = por %p56, %p57
      %p59 = scmp.ne.s32.totalorder %s45, %s46
      %p60 = scmp.eq.s32.totalorder %s24, 1
      %p61 = por %p59, %p60
      %p63 = scmp.ne.s32.totalorder %s46, %s62
      %p64 = scmp.eq.s32.totalorder %s24, 0
      %p65 = por %p63, %p64
      %s66 = ssub.s32 %s25, %s37
      %p67 = scmp.eq.s32.totalorder %s66, 0
      %s69 = sadd.s32 %s68, 1
      %s70 = scalar_select %p67, %s68, %s69
      %p73 = pneg %p67
      %p74 = scmp.eq.s32.totalorder %s18, 1
      %p75 = por %p73, %p74
      %p76 = scmp.ne.s32.totalorder %s68, %s71
      %p77 = scmp.eq.s32.totalorder %s18, 0
      %p78 = por %p76, %p77
      %p79 = scmp.ne.s32.totalorder %s68, %s71
      %p80 = scmp.eq.s32.totalorder %s23, 1
      %p81 = por %p79, %p80
      %p82 = scmp.ne.s32.totalorder %s71, %s72
      %p83 = scmp.eq.s32.totalorder %s23, 0
      %p84 = por %p82, %p83
      %p85 = scmp.ne.s32.totalorder %s71, %s72
      %p86 = scmp.eq.s32.totalorder %s24, 1
      %p87 = por %p85, %p86
      %p89 = scmp.ne.s32.totalorder %s72, %s88
      %p90 = scmp.eq.s32.totalorder %s24, 0
      %p91 = por %p89, %p90
      %s93 = sadd.s32 %s92, 1
      %p96 = scmp.eq.s32.totalorder %s18, 1
      %p97 = scmp.ne.s32.totalorder %s92, %s94
      %p98 = scmp.eq.s32.totalorder %s18, 0
      %p99 = por %p97, %p98
      %p100 = scmp.ne.s32.totalorder %s92, %s94
      %p101 = scmp.eq.s32.totalorder %s23, 1
      %p102 = por %p100, %p101
      %p103 = scmp.ne.s32.totalorder %s94, %s95
      %p104 = scmp.eq.s32.totalorder %s23, 0
      %p105 = por %p103, %p104
      %p106 = scmp.ne.s32.totalorder %s94, %s95
      %p107 = scmp.eq.s32.totalorder %s24, 1
      %p108 = por %p106, %p107
      %p110 = scmp.ne.s32.totalorder %s95, %s109
      %p111 = scmp.eq.s32.totalorder %s24, 0
      %p112 = por %p110, %p111
      %s113 = ssub.s32 %s25, %s37
      %s114 = ssub.s32 %s26, %s33
      %s115 = sor.u32 %s113, %s114
      %p116 = scmp.eq.s32.totalorder %s115, 0
      %s118 = sadd.s32 %s117, 1
      %s119 = scalar_select %p116, %s117, %s118
      %p122 = pneg %p116
      %p123 = scmp.eq.s32.totalorder %s18, 1
      %p124 = por %p122, %p123
      %p125 = scmp.ne.s32.totalorder %s117, %s120
      %p126 = scmp.eq.s32.totalorder %s18, 0
      %p127 = por %p125, %p126
      %p128 = scmp.ne.s32.totalorder %s117, %s120
      %p129 = scmp.eq.s32.totalorder %s23, 1
      %p130 = por %p128, %p129
      %p131 = scmp.ne.s32.totalorder %s120, %s121
      %p132 = scmp.eq.s32.totalorder %s23, 0
      %p133 = por %p131, %p132
      %p134 = scmp.ne.s32.totalorder %s120, %s121
      %p135 = scmp.eq.s32.totalorder %s24, 1
      %p136 = por %p134, %p135
      %p138 = scmp.ne.s32.totalorder %s121, %s137
      %p139 = scmp.eq.s32.totalorder %s24, 0
      %p140 = por %p138, %p139
      %p141 = scmp.le.s32.totalorder 1, %s18
      %p142 = scmp.lt.s32.totalorder %s18, 3
      %p143 = pnand %p141, %p142
      %p144 = pneg %p143
      // Predicated region
      $region9: #{tpu_custom_call.1} parent=5 // pred_check
        _
      $region10: #{tpu_custom_call.1} parent=5 // pred_check_branch
        %146 = sbr.rel (%p143) target = $region12
      $region11: #{tpu_custom_call.1} parent=5 // pred_region
        %s147 = ssub.s32 %s18, 1
        // Predicated region
        $region13: #{tpu_custom_call.1} parent=11 // pred_check
          %p148 = pneg %p105
        $region14: #{tpu_custom_call.1} parent=11 // pred_check_branch
          %150 = sbr.rel (%p148) target = $region16
        $region15: #{tpu_custom_call.1} parent=11 // pred_region
          _
        $region16: #{tpu_custom_call.1} parent=11 // pred_fallthru
          _
      $region12: #{tpu_custom_call.1} parent=5 // pred_fallthru
        _
      %p151 = scmp.lt.s32.totalorder %s18, 2
      // Predicated region
      $region17: #{tpu_custom_call.1} parent=5 // pred_check
        %p152 = pneg %p151
      $region18: #{tpu_custom_call.1} parent=5 // pred_check_branch
        %154 = sbr.rel (%p152) target = $region20
      $region19: #{tpu_custom_call.1} parent=5 // pred_region
        // Predicated region
        $region21: #{tpu_custom_call.1} parent=19 // pred_check
          %p155 = pneg %p52
        $region22: #{tpu_custom_call.1} parent=19 // pred_check_branch
          %157 = sbr.rel (%p155) target = $region24
        $region23: #{tpu_custom_call.1} parent=19 // pred_region
          %s158 = sand.u32 %s42, 1
          %s159 = scalar_lea.sflag [#allocation3], %s158
          %s160 = sand.u32 %s42, 1
          %s161 = smul.addr %s160, 16
          %s162 = scalar_lea.vmem [#allocation2], %s161
          %s163 = smul.u32 2, %s26
          %s165 = ssub.s32 256, 256
          %166 = vsyncadd %s159, %s165
          %s167 = smul.addr %s25, 2
          %s168 = sadd.s32 %s163, %s167
          %s169 = smul.addr %s168, 128
          %s170 = scalar_lea.hbm %s0, %s169
          %s171 = sshll.u32 %s162, 4
          %s172 = int_to_ptr.vmem [resolvable:$true] %s171
          %177 = dma.hbm_to_vmem [thread:$0]  %s170, 256, %s172, %s159, 128, 128, 8
        $region24: #{tpu_custom_call.1} parent=19 // pred_fallthru
          _
        // Predicated region
        $region25: #{tpu_custom_call.1} parent=19 // pred_check
          %p178 = pneg %p78
        $region26: #{tpu_custom_call.1} parent=19 // pred_check_branch
          %180 = sbr.rel (%p178) target = $region28
        $region27: #{tpu_custom_call.1} parent=19 // pred_region
          %s181 = sand.u32 %s68, 1
          %s182 = scalar_lea.sflag [#allocation6], %s181
          %s183 = sand.u32 %s68, 1
          %s184 = smul.addr %s183, 64
          %s185 = scalar_lea.vmem [#allocation5], %s184
          %s187 = ssub.s32 1024, 1024
          %188 = vsyncadd %s182, %s187
          %s189 = smul.addr %s25, 16
          %s190 = smul.addr %s189, 64
          %s191 = scalar_lea.hbm %s1, %s190
          %s192 = sshll.u32 %s185, 4
          %s193 = int_to_ptr.vmem [resolvable:$true] %s192
          %198 = dma.hbm_to_vmem [thread:$0]  %s191, 1024, %s193, %s182, 64, 64, 4
        $region28: #{tpu_custom_call.1} parent=19 // pred_fallthru
          _
      $region20: #{tpu_custom_call.1} parent=5 // pred_fallthru
        _
      %p199 = scmp.le.s32.totalorder 1, %s18
      %p200 = scmp.lt.s32.totalorder %s18, 3
      %p201 = pnand %p199, %p200
      %p202 = pneg %p201
      // Predicated region
      $region29: #{tpu_custom_call.1} parent=5 // pred_check
        _
      $region30: #{tpu_custom_call.1} parent=5 // pred_check_branch
        %204 = sbr.rel (%p201) target = $region32
      $region31: #{tpu_custom_call.1} parent=5 // pred_region
        %s205 = ssub.s32 %s18, 1
        %s206 = sand.u32 %s45, 1
        %s207 = scalar_lea.sflag [#allocation3], %s206
        %s208 = sand.u32 %s45, 1
        %s209 = smul.addr %s208, 16
        %s210 = scalar_lea.vmem [#allocation2], %s209
        // Predicated region
        $region33: #{tpu_custom_call.1} parent=31 // pred_check
          %p211 = pneg %p58
        $region34: #{tpu_custom_call.1} parent=31 // pred_check_branch
          %213 = sbr.rel (%p211) target = $region36
        $region35: #{tpu_custom_call.1} parent=31 // pred_region
          %214 = dma.done %s207, 256
        $region36: #{tpu_custom_call.1} parent=31 // pred_fallthru
          _
        %s215 = sand.u32 %s71, 1
        %s216 = scalar_lea.sflag [#allocation6], %s215
        %s217 = sand.u32 %s71, 1
        %s218 = smul.addr %s217, 64
        %s219 = scalar_lea.vmem [#allocation5], %s218
        // Predicated region
        $region37: #{tpu_custom_call.1} parent=31 // pred_check
          %p220 = pneg %p84
        $region38: #{tpu_custom_call.1} parent=31 // pred_check_branch
          %222 = sbr.rel (%p220) target = $region40
        $region39: #{tpu_custom_call.1} parent=31 // pred_region
          %223 = dma.done %s216, 1024
        $region40: #{tpu_custom_call.1} parent=31 // pred_fallthru
          _
        %s224 = sand.u32 %s45, 1
        %s225 = scalar_lea.sflag [#allocation3], %s224
        %s226 = sand.u32 %s45, 1
        %s227 = smul.addr %s226, 16
        %s228 = scalar_lea.vmem [#allocation2], %s227
        %p229 = pneg %p58
        %p230 = pneg %p55
        %s231 = sand.u32 %s71, 1
        %s232 = scalar_lea.sflag [#allocation6], %s231
        %s233 = sand.u32 %s71, 1
        %s234 = smul.addr %s233, 64
        %s235 = scalar_lea.vmem [#allocation5], %s234
        %p236 = pneg %p84
        %p237 = pneg %p81
        %p238 = pneg %p105
        %p239 = pneg %p102
        %p240 = pneg %p133
        %p241 = pneg %p130
        %s242 = sand.u32 %s120, 1
        %s243 = scalar_lea.sflag [#allocation4], %s242
        %s244 = sand.u32 %s120, 1
        %s245 = smul.addr %s244, 16
        %s246 = scalar_lea.vmem [#allocation7], %s245
        %s247 = smul.u32 2, %s28
        %s248 = smul.u32 2, %s28
        %v250 = vld [vmem:[%s210] sm:$0xff]
        %v251 = vld [vmem:[%s210 + $0x8] sm:$0xff]
        %v252 = vpack.c.bf16 %v251, %v250
        %v253 = vld [vmem:[%s219] sm:$0xf]
        %v254 = vld [vmem:[%s219 + $0x4] sm:$0xf]
        %v255 = vld [vmem:[%s219 + $0x8] sm:$0xf]
        %v256 = vld [vmem:[%s219 + $0xc] sm:$0xf]
        %v257 = vld [vmem:[%s219 + $0x10] sm:$0xf]
        %v258 = vld [vmem:[%s219 + $0x14] sm:$0xf]
        %v259 = vld [vmem:[%s219 + $0x18] sm:$0xf]
        %v260 = vld [vmem:[%s219 + $0x1c] sm:$0xf]
        %v261 = vld [vmem:[%s219 + $0x20] sm:$0xf]
        %v262 = vld [vmem:[%s219 + $0x24] sm:$0xf]
        %v263 = vld [vmem:[%s219 + $0x28] sm:$0xf]
        %v264 = vld [vmem:[%s219 + $0x2c] sm:$0xf]
        %v265 = vld [vmem:[%s219 + $0x30] sm:$0xf]
        %v266 = vld [vmem:[%s219 + $0x34] sm:$0xf]
        %v267 = vld [vmem:[%s219 + $0x38] sm:$0xf]
        %v268 = vld [vmem:[%s219 + $0x3c] sm:$0xf]
        %v269 = vld [vmem:[%s2] sm:$0x1]
        %v271 = vlaneseq
        %v272 = vshrl.u32 %v271, 7
        %v273 = vsub.s32 0, %v272
        %v274 = vrot.slane %v269, %v273
        %v292 = vunpack.c.l.b16 %v253
        %v293 = vunpack.c.l.b16 %v254
        %v294 = vunpack.c.l.b16 %v255
        %v295 = vunpack.c.l.b16 %v256
        %v296 = vunpack.c.l.b16 %v257
        %v297 = vunpack.c.l.b16 %v258
        %v298 = vunpack.c.l.b16 %v259
        %v299 = vunpack.c.l.b16 %v260
        %v300 = vunpack.c.l.b16 %v261
        %v301 = vunpack.c.l.b16 %v262
        %v302 = vunpack.c.l.b16 %v263
        %v303 = vunpack.c.l.b16 %v264
        %v304 = vunpack.c.l.b16 %v265
        %v305 = vunpack.c.l.b16 %v266
        %v306 = vunpack.c.l.b16 %v267
        %v307 = vunpack.c.l.b16 %v268
        %v308 = vpack.c.b16 %v293, %v292
        %v309 = vpack.c.b16 %v295, %v294
        %v310 = vpack.c.b16 %v297, %v296
        %v311 = vpack.c.b16 %v299, %v298
        %v312 = vpack.c.b16 %v301, %v300
        %v313 = vpack.c.b16 %v303, %v302
        %v314 = vpack.c.b16 %v305, %v304
        %v315 = vpack.c.b16 %v307, %v306
        %324 = vmatprep.subr.bf16.mxu0 0
        %325 = vmatpush1.bf16.msra.mxu0 %v308
        %326 = vmatprep.subr.bf16.mxu0 0
        %327 = vmatpush1.bf16.msra.mxu0 %v309
        %328 = vmatprep.subr.bf16.mxu0 0
        %329 = vmatpush1.bf16.msra.mxu0 %v310
        %330 = vmatprep.subr.bf16.mxu0 0
        %331 = vmatpush1.bf16.msra.mxu0 %v311
        %332 = vmatprep.subr.bf16.mxu0 0
        %333 = vmatpush1.bf16.msra.mxu0 %v312
        %334 = vmatprep.subr.bf16.mxu0 0
        %335 = vmatpush1.bf16.msra.mxu0 %v313
        %336 = vmatprep.subr.bf16.mxu0 0
        %337 = vmatpush1.bf16.msra.mxu0 %v314
        %338 = vmatprep.subr.bf16.mxu0 0
        %339 = vmatpush1.bf16.msra.mxu0 %v315
        %340 = vmatprep.subr.bf16.mxu0 0
        %341 = vmatpush1.bf16.msra.mxu0 0
        %342 = vmatprep.subr.bf16.mxu0 0
        %343 = vmatpush1.bf16.msra.mxu0 0
        %344 = vmatprep.subr.bf16.mxu0 0
        %345 = vmatpush1.bf16.msra.mxu0 0
        %346 = vmatprep.subr.bf16.mxu0 0
        %347 = vmatpush1.bf16.msra.mxu0 0
        %348 = vmatprep.subr.bf16.mxu0 0
        %349 = vmatpush1.bf16.msra.mxu0 0
        %350 = vmatprep.subr.bf16.mxu0 0
        %351 = vmatpush1.bf16.msra.mxu0 0
        %352 = vmatprep.subr.bf16.mxu0 0
        %353 = vmatpush1.bf16.msra.mxu0 0
        %354 = vmatprep.subr.bf16.mxu0 0
        %355 = vmatpush1.bf16.msra.mxu0 0
        %356 = vmatprep.mubr.bf16.mxu0 0
        %357 = vmatmul.mubr.bf16.gmra.mrb[0].mxu0 %v252
        %v358 = vpop.f32.mrb[0].mxu0
        %v359 = vadd.f32 %v274, %v358
        %v360 = vpop.f32.mrb[0].mxu0
        %v361 = vpop.f32.mrb[0].mxu0
        %v362 = vadd.f32 %v274, %v361
        %v363 = vpop.f32.mrb[0].mxu0
        %364 = vdwg.mxu0
        %vm365 = vcmp.ge.f32.partialorder %v359, 0.0
        %vm366 = vcmp.ge.f32.partialorder %v362, 0.0
        %v367 = vmul.f32 %v359, 0.2
        %v368 = vmul.f32 %v362, 0.2
        %v369 = vsel %vm365, %v359, %v367
        %v370 = vsel %vm366, %v362, %v368
        %371 = vst [vmem:[%s246] sm:$0xff] %v369
        %372 = vst [vmem:[%s246 + $0x8] sm:$0xff] %v370
        %s373 = sand.u32 %s120, 1
        %s374 = scalar_lea.sflag [#allocation4], %s373
        %s375 = sand.u32 %s120, 1
        %s376 = smul.addr %s375, 16
        %s377 = scalar_lea.vmem [#allocation7], %s376
        // Predicated region
        $region41: #{tpu_custom_call.1} parent=31 // pred_check
          %p378 = pneg %p130
        $region42: #{tpu_custom_call.1} parent=31 // pred_check_branch
          %380 = sbr.rel (%p378) target = $region44
        $region43: #{tpu_custom_call.1} parent=31 // pred_region
          %s381 = smul.u32 2, %s28
          %s383 = ssub.s32 256, 256
          %384 = vsyncadd %s374, %s383
          %s385 = smul.addr %s27, 2
          %s386 = sadd.s32 %s381, %s385
          %s387 = smul.addr %s386, 128
          %s388 = scalar_lea.hbm %s3, %s387
          %s389 = sshll.u32 %s377, 4
          %s390 = int_to_ptr.vmem [resolvable:$true] %s389
          %395 = dma.vmem_to_hbm [thread:$0]  %s390, 256, %s388, %s374, 128, 128, 8
        $region44: #{tpu_custom_call.1} parent=31 // pred_fallthru
          _
      $region32: #{tpu_custom_call.1} parent=5 // pred_fallthru
        _
      %p396 = scmp.le.s32.totalorder 2, %s18
      // Predicated region
      $region45: #{tpu_custom_call.1} parent=5 // pred_check
        %p397 = pneg %p396
      $region46: #{tpu_custom_call.1} parent=5 // pred_check_branch
        %399 = sbr.rel (%p397) target = $region48
      $region47: #{tpu_custom_call.1} parent=5 // pred_region
        %s400 = ssub.s32 %s18, 2
        // Predicated region
        $region49: #{tpu_custom_call.1} parent=47 // pred_check
          %p401 = pneg %p136
        $region50: #{tpu_custom_call.1} parent=47 // pred_check_branch
          %403 = sbr.rel (%p401) target = $region52
        $region51: #{tpu_custom_call.1} parent=47 // pred_region
          %s404 = sand.u32 %s121, 1
          %s405 = scalar_lea.sflag [#allocation4], %s404
          %s406 = sand.u32 %s121, 1
          %s407 = smul.addr %s406, 16
          %s408 = scalar_lea.vmem [#allocation7], %s407
          %409 = dma.done %s405, 256
        $region52: #{tpu_custom_call.1} parent=47 // pred_fallthru
          _
      $region48: #{tpu_custom_call.1} parent=5 // pred_fallthru
        _
    $region6: #{tpu_custom_call.1} parent=1 // loop_footer
      %s22 = sadd.s32 1, %s18
    $region7: #{tpu_custom_call.1} parent=1 // loop_footer_branch
      %17 = sbr.rel target = $region3
    $region8: #{tpu_custom_call.1} parent=1 // loop_exit
      _
    %410 = vsyncpa [#allocation3], 1
    %s411 = scalar_lea.sflag [#allocation3], 1
    %412 = vsyncpa %s411, 1
    %413 = vsyncpa [#allocation6], 1
    %s414 = scalar_lea.sflag [#allocation6], 1
    %415 = vsyncpa %s414, 1
    %416 = vsyncpa [#allocation4], 1
    %s417 = scalar_lea.sflag [#allocation4], 1
    %418 = vsyncpa %s417, 1

</llo_original>
